<compile_context>
chip_gen: v7x
topology: tpu7x:2x2x1
jax: 0.10.0
libtpu: 0.0.40
codegen_flags: <defaults>
</compile_context>

<pallas_src>
import functools

import jax
import jax.numpy as jnp
import numpy as np
from jax import lax
from jax.experimental import pallas as pl
from jax.experimental.pallas import tpu as pltpu


# ----------------------------- small helpers --------------------------------

def _round_up(n, m):
    return ((n + m - 1) // m) * m


def _largest_divisor_leq(n, cap):
    for d in range(min(n, cap), 0, -1):
        if n % d == 0:
            return d
    return 1


def _dsize(dt):
    return jnp.dtype(dt).itemsize


def _choose_t_chunk(t):
    """Time chunk in [8, 64]; pad T up when no clean divisor exists."""
    d = _largest_divisor_leq(t, 64)
    if d >= 8:
        return d, t
    t_chunk = min(32, _round_up(t, 8))
    return t_chunk, _round_up(t, t_chunk)


def _pack_gate_weights(w, hp):
    """PyTorch (4H, In) weight -> (In, 4*Hp); each gate lane-aligned, zero-padded."""
    four_h, n_in = w.shape
    h = four_h // 4
    w4 = w.reshape(4, h, n_in)                       # [i, f, g, o]
    w4 = jnp.pad(w4, ((0, 0), (0, hp - h), (0, 0)))  # pad gate-output dim to Hp
    return jnp.transpose(w4, (2, 0, 1)).reshape(n_in, 4 * hp)


def _pack_gate_bias(b, hp):
    h = b.shape[0] // 4
    b4 = jnp.pad(b.reshape(4, h), ((0, 0), (0, hp - h)))
    return b4.reshape(1, 4 * hp)


# ------------------- Stage 1: hoisted input projection ----------------------

def _xproj_kernel(x_ref, w_ref, b_ref, out_ref):
    acc = jnp.dot(x_ref[...], w_ref[...], preferred_element_type=jnp.float32)
    out_ref[...] = (acc + b_ref[...]).astype(out_ref.dtype)


def _input_projection(x2d, w, bias, compute_dtype):
    """x2d: (R, In), w: (In, G), bias: (1, G) f32 -> (R, G) in compute_dtype."""
    R, Iin = x2d.shape
    G = w.shape[1]

    # Big row tile (lane-dense output store); pad rows instead of shrinking tile.
    rm = 512 if R >= 512 else R          # R is a multiple of 8
    R_pad = _round_up(R, rm)
    if R_pad != R:
        x2d = jnp.pad(x2d, ((0, R_pad - R), (0, 0)))

    # Tile the gate axis only when it is large, so rm stays big within VMEM.
    if G <= 2048:
        tn = G
    else:
        tn = 1024 if G % 1024 == 0 else 512
    weight_resident = (tn == G)

    in_ds, w_ds, out_ds = _dsize(x2d.dtype), _dsize(w.dtype), _dsize(compute_dtype)
    w_bufs = 1 if weight_resident else 2
    vmem_bytes = (2 * rm * Iin * in_ds          # x tile, double-buffered
                  + w_bufs * Iin * tn * w_ds    # weight tile
                  + w_bufs * tn * 4             # bias tile (f32)
                  + 2 * rm * tn * out_ds)       # out tile, double-buffered
    vmem_limit = min(max(int(vmem_bytes * 1.5) + (2 << 20), 4 << 20), 100 << 20)

    if weight_resident:
        w_spec = pl.BlockSpec((Iin, tn), lambda r, j: (0, j),
                              pipeline_mode=pl.Buffered(1))
        b_spec = pl.BlockSpec((1, tn), lambda r, j: (0, j),
                              pipeline_mode=pl.Buffered(1))
    else:
        w_spec = pl.BlockSpec((Iin, tn), lambda r, j: (0, j))
        b_spec = pl.BlockSpec((1, tn), lambda r, j: (0, j))

    cost = pl.CostEstimate(
        flops=2 * R_pad * Iin * G,
        transcendentals=0,
        bytes_accessed=R_pad * Iin * in_ds + Iin * G * w_ds + R_pad * G * out_ds,
    )

    out = pl.pallas_call(
        _xproj_kernel,
        out_shape=jax.ShapeDtypeStruct((R_pad, G), compute_dtype),
        grid_spec=pltpu.PrefetchScalarGridSpec(
            num_scalar_prefetch=0,
            grid=(R_pad // rm, G // tn),
            in_specs=[
                pl.BlockSpec((rm, Iin), lambda r, j: (r, 0)),
                w_spec,
                b_spec,
            ],
            out_specs=pl.BlockSpec((rm, tn), lambda r, j: (r, j)),
        ),
        compiler_params=pltpu.CompilerParams(
            dimension_semantics=("parallel", "parallel"),
            vmem_limit_bytes=vmem_limit),
        cost_estimate=cost,
    )(x2d, w, bias)
    return out[:R] if R_pad != R else out


# --------------------- Stage 2: sequential recurrence ------------------------

def _lstm_recurrent_kernel(xg_ref, whh_ref, out_ref, h_out_ref, c_out_ref,
                           h_sc, c_sc, *, hidden_pad, t_chunk, t_real, t_pad):
    @pl.when(pl.program_id(0) == 0)
    def _():
        h_sc[...] = jnp.zeros_like(h_sc)
        c_sc[...] = jnp.zeros_like(c_sc)

    Hp = hidden_pad
    whh = whh_ref[...]                                # hoisted (resident) weight
    needs_mask = (t_pad != t_real)                    # static (trace-time) bool
    t0 = pl.program_id(0) * t_chunk

    def step(s, carry):
        h_prev, c_prev = carry                        # f32 (Bp, Hp)
        # f32 matmul result promotes the (possibly bf16) XG add implicitly.
        gates = jnp.dot(h_prev.astype(whh.dtype), whh,
                        preferred_element_type=jnp.float32) + xg_ref[s]
        i_g = jax.nn.sigmoid(gates[:, 0 * Hp:1 * Hp])
        f_g = jax.nn.sigmoid(gates[:, 1 * Hp:2 * Hp])
        g_g = jnp.tanh(gates[:, 2 * Hp:3 * Hp])
        o_g = jax.nn.sigmoid(gates[:, 3 * Hp:4 * Hp])
        c_new = f_g * c_prev + i_g * g_g
        h_new = o_g * jnp.tanh(c_new)
        if needs_mask:
            valid = (t0 + s) < t_real                 # padded timesteps: hold carry
            h_new = jnp.where(valid, h_new, h_prev)
            c_new = jnp.where(valid, c_new, c_prev)
        out_ref[s] = h_new.astype(out_ref.dtype)
        return h_new, c_new

    h, c = lax.fori_loop(0, t_chunk, step, (h_sc[...], c_sc[...]),
                         unroll=min(8, t_chunk))
    h_sc[...] = h
    c_sc[...] = c

    # Final states written once, on the last time-chunk only.
    @pl.when(pl.program_id(0) == pl.num_programs(0) - 1)
    def _():
        h_out_ref[...] = h.astype(h_out_ref.dtype)
        c_out_ref[...] = c.astype(c_out_ref.dtype)


def lstm_layer_pallas(x_pad, w_ih, w_hh, b_ih, b_hh, hidden_pad,
                      compute_dtype, weight_dtype, t_chunk, t_real):
    """One LSTM layer on padded, time-major input.

    x_pad : (T_pad, Bp, Iin)  (Bp sublane-padded; T padded to t_chunk, zeros)
    w_ih  : (4H, I_real), w_hh : (4H, H), b_ih/b_hh : (4H,)  -- PyTorch shapes
    returns: out (T_pad, Bp, Hp) in compute_dtype, h_last/c_last (Bp, Hp) f32
             (h_last/c_last reflect the real T, padded steps are masked out)
    """
    T_pad, Bp, Iin = x_pad.shape
    H = w_hh.shape[1]
    Hp = hidden_pad
    G = 4 * Hp

    wih_t = _pack_gate_weights(w_ih, Hp)                       # (I_real, G)
    if Iin > wih_t.shape[0]:
        wih_t = jnp.pad(wih_t, ((0, Iin - wih_t.shape[0]), (0, 0)))
    whh_t = _pack_gate_weights(w_hh, Hp)                       # (H, G)
    whh_t = jnp.pad(whh_t, ((0, Hp - H), (0, 0)))              # (Hp, G)
    bias = _pack_gate_bias((b_ih + b_hh).astype(jnp.float32), Hp)  # (1, G) f32

    wih_t = wih_t.astype(weight_dtype)
    whh_t = whh_t.astype(weight_dtype)

    # Stage 1: one big matmul over all T_pad*Bp rows (bias folded in here).
    xg = _input_projection(x_pad.reshape(T_pad * Bp, Iin), wih_t, bias,
                           compute_dtype).reshape(T_pad, Bp, G)

    # Stage 2: sequential recurrence, t_chunk timesteps per grid step.
    kernel = functools.partial(_lstm_recurrent_kernel, hidden_pad=Hp,
                               t_chunk=t_chunk, t_real=t_real, t_pad=T_pad)

    wsize, dsize = _dsize(weight_dtype), _dsize(compute_dtype)
    vmem_bytes = (Hp * G * wsize                    # W_hh^T, single-buffered
                  + 2 * t_chunk * Bp * G * dsize    # XG chunk, double-buffered
                  + 2 * t_chunk * Bp * Hp * dsize   # out chunk, double-buffered
                  + 2 * 2 * Bp * Hp * 4             # h_out / c_out (f32)
                  + 2 * Bp * Hp * 4)                # h/c carry scratch
    vmem_limit = min(max(int(vmem_bytes * 1.5) + (2 << 20), 4 << 20), 100 << 20)

    cost = pl.CostEstimate(
        flops=2 * T_pad * Bp * Hp * G + 10 * T_pad * Bp * Hp,
        transcendentals=5 * T_pad * Bp * Hp,
        bytes_accessed=(Hp * G * wsize + T_pad * Bp * G * dsize
                        + T_pad * Bp * Hp * dsize + 2 * Bp * Hp * 4),
    )

    out, h_last, c_last = pl.pallas_call(
        kernel,
        out_shape=(
            jax.ShapeDtypeStruct((T_pad, Bp, Hp), compute_dtype),
            jax.ShapeDtypeStruct((Bp, Hp), jnp.float32),
            jax.ShapeDtypeStruct((Bp, Hp), jnp.float32),
        ),
        grid_spec=pltpu.PrefetchScalarGridSpec(
            num_scalar_prefetch=0,
            grid=(T_pad // t_chunk,),
            in_specs=[
                pl.BlockSpec((t_chunk, Bp, G), lambda t: (t, 0, 0)),   # XG chunk
                pl.BlockSpec((Hp, G), lambda t: (0, 0),                # W_hh^T resident,
                             pipeline_mode=pl.Buffered(1)),            # single-buffered
            ],
            out_specs=[
                pl.BlockSpec((t_chunk, Bp, Hp), lambda t: (t, 0, 0)),  # output chunk
                pl.BlockSpec((Bp, Hp), lambda t: (0, 0)),              # final hidden
                pl.BlockSpec((Bp, Hp), lambda t: (0, 0)),              # final cell
            ],
            scratch_shapes=[
                pltpu.VMEM((Bp, Hp), jnp.float32),                     # h carry
                pltpu.VMEM((Bp, Hp), jnp.float32),                     # c carry
            ],
        ),
        compiler_params=pltpu.CompilerParams(
            dimension_semantics=("arbitrary",),                        # time is sequential
            vmem_limit_bytes=vmem_limit),
        cost_estimate=cost,
    )(xg, whh_t)

    return out, h_last, c_last


# ------------------------------- Encoder -------------------------------------

def encoder_forward(x, params, compute_dtype=jnp.float32, weight_dtype=None):
    """Replicates Encoder.forward: output, (hidden, cell) of a stacked LSTM.

    x : (B, T, input_size)  (batch_first, like PyTorch)
    weight_dtype: dtype of W_ih/W_hh in the kernels (defaults to compute_dtype).
        bf16 weights with f32 compute keeps f32 accumulation + f32 h/c carry
        while halving weight streaming in the GEMV-bound recurrence.
    returns: output (B, T, H), hidden (L, B, H), cell (L, B, H)
    """
    if weight_dtype is None:
        weight_dtype = compute_dtype
    B, T, _ = x.shape
    H = params[0][1].shape[1]
    Hp = _round_up(H, 128)
    b_mult = 16 if jnp.dtype(compute_dtype) == jnp.dtype(jnp.bfloat16) else 8
    Bp = _round_up(max(B, b_mult), b_mult)
    t_chunk, T_pad = _choose_t_chunk(T)

    x_tm = jnp.transpose(x, (1, 0, 2))                            # (T, B, I)
    # Zero-pad time (masked in-kernel) and batch (independent rows, sliced off).
    layer_in = jnp.pad(x_tm, ((0, T_pad - T), (0, Bp - B), (0, 0))).astype(compute_dtype)

    h_list, c_list = [], []
    for (w_ih, w_hh, b_ih, b_hh) in params:
        layer_out, h_last, c_last = lstm_layer_pallas(
            layer_in, w_ih, w_hh, b_ih, b_hh, Hp,
            compute_dtype, weight_dtype, t_chunk, T)
        h_list.append(h_last[:B, :H])
        c_list.append(c_last[:B, :H])
        layer_in = layer_out                                      # stays on device

    output = jnp.transpose(layer_in[:T, :B, :H], (1, 0, 2)).astype(x.dtype)
    hidden = jnp.stack(h_list, axis=0).astype(x.dtype)            # (L, B, H)
    cell = jnp.stack(c_list, axis=0).astype(x.dtype)              # (L, B, H)
    return output, hidden, cell


def init_lstm_params(key, input_size, hidden_size, num_layers):
    """Deterministic init matching PyTorch LSTM param shapes (U(-k, k), k=1/sqrt(H))."""
    params = []
    k = 1.0 / np.sqrt(hidden_size)
    for layer in range(num_layers):
        in_sz = input_size if layer == 0 else hidden_size
        key, k1, k2, k3, k4 = jax.random.split(key, 5)
        w_ih = jax.random.uniform(k1, (4 * hidden_size, in_sz), jnp.float32, -k, k)
        w_hh = jax.random.uniform(k2, (4 * hidden_size, hidden_size), jnp.float32, -k, k)
        b_ih = jax.random.uniform(k3, (4 * hidden_size,), jnp.float32, -k, k)
        b_hh = jax.random.uniform(k4, (4 * hidden_size,), jnp.float32, -k, k)
        params.append((w_ih, w_hh, b_ih, b_hh))
    return params


def encoder_reference(x, params):
    """Pure-JAX reference (lax.scan) with identical LSTM semantics."""
    B = x.shape[0]
    layer_in = jnp.transpose(x, (1, 0, 2))   # (T, B, I)
    h_list, c_list = [], []
    for (w_ih, w_hh, b_ih, b_hh) in params:
        H = w_hh.shape[1]

        def step(carry, x_t):
            h, c = carry
            gates = x_t @ w_ih.T + h @ w_hh.T + b_ih + b_hh
            i_g = jax.nn.sigmoid(gates[:, 0 * H:1 * H])
            f_g = jax.nn.sigmoid(gates[:, 1 * H:2 * H])
            g_g = jnp.tanh(gates[:, 2 * H:3 * H])
            o_g = jax.nn.sigmoid(gates[:, 3 * H:4 * H])
            c_new = f_g * c + i_g * g_g
            h_new = o_g * jnp.tanh(c_new)
            return (h_new, c_new), h_new

        init = (jnp.zeros((B, H), jnp.float32), jnp.zeros((B, H), jnp.float32))
        (h_last, c_last), outs = lax.scan(step, init, layer_in)
        h_list.append(h_last)
        c_list.append(c_last)
        layer_in = outs
    return (jnp.transpose(layer_in, (1, 0, 2)),
            jnp.stack(h_list, 0), jnp.stack(c_list, 0))


if __name__ == "__main__":
    batch, seq_len = 2, 8
    input_size, hidden_size, num_layers = 4, 32, 2

    key = jax.random.PRNGKey(0)
    key, xkey = jax.random.split(key)
    x = jax.random.normal(xkey, (batch, seq_len, input_size), jnp.float32)
    params = init_lstm_params(key, input_size, hidden_size, num_layers)

    out_ref, hid_ref, cell_ref = encoder_reference(x, params)

    # 1) f32 compute / f32 weights: strict check (matches PyTorch default precision).
    output, hidden, cell = encoder_forward(x, params, compute_dtype=jnp.float32)
    jax.block_until_ready((output, hidden, cell))
    np.testing.assert_allclose(np.asarray(output), np.asarray(out_ref), rtol=1e-5, atol=1e-5)
    np.testing.assert_allclose(np.asarray(hidden), np.asarray(hid_ref), rtol=1e-5, atol=1e-5)
    np.testing.assert_allclose(np.asarray(cell), np.asarray(cell_ref), rtol=1e-5, atol=1e-5)
    assert output.shape == (batch, seq_len, hidden_size)
    assert hidden.shape == (num_layers, batch, hidden_size)
    assert cell.shape == (num_layers, batch, hidden_size)

    # 2) Awkward T (no clean divisor) -> exercises time padding + in-kernel masking.
    x_odd = x[:, :7, :]
    out7, hid7, cell7 = encoder_forward(x_odd, params, compute_dtype=jnp.float32)
    jax.block_until_ready((out7, hid7, cell7))
    out7_r, hid7_r, cell7_r = encoder_reference(x_odd, params)
    np.testing.assert_allclose(np.asarray(out7), np.asarray(out7_r), rtol=1e-5, atol=1e-5)
    np.testing.assert_allclose(np.asarray(hid7), np.asarray(hid7_r), rtol=1e-5, atol=1e-5)
    np.testing.assert_allclose(np.asarray(cell7), np.asarray(cell7_r), rtol=1e-5, atol=1e-5)

    # 3) bf16 weights + f32 accumulation/carry (halves weight streaming in Stage 2).
    out_wbf, hid_wbf, cell_wbf = encoder_forward(
        x, params, compute_dtype=jnp.float32, weight_dtype=jnp.bfloat16)
    jax.block_until_ready((out_wbf, hid_wbf, cell_wbf))
    np.testing.assert_allclose(np.asarray(out_wbf), np.asarray(out_ref), rtol=0.05, atol=0.05)
    np.testing.assert_allclose(np.asarray(hid_wbf), np.asarray(hid_ref), rtol=0.05, atol=0.05)
    np.testing.assert_allclose(np.asarray(cell_wbf), np.asarray(cell_ref), rtol=0.05, atol=0.05)

    # 4) Fully bf16 operand path (MXU-native), loose tolerance.
    out_bf, hid_bf, cell_bf = encoder_forward(x, params, compute_dtype=jnp.bfloat16)
    jax.block_until_ready((out_bf, hid_bf, cell_bf))
    np.testing.assert_allclose(np.asarray(out_bf), np.asarray(out_ref), rtol=0.1, atol=0.1)
    np.testing.assert_allclose(np.asarray(hid_bf), np.asarray(hid_ref), rtol=0.1, atol=0.1)
    np.testing.assert_allclose(np.asarray(cell_bf), np.asarray(cell_ref), rtol=0.1, atol=0.1)

    print("KERNEL_OK")
</pallas_src>

<mosaic_0001>
module attributes {stable_mosaic.version = 11 : i64} {
  func.func @_xproj_kernel(%arg0: i32, %arg1: i32, %arg2: memref<64x4xf32, #tpu.memory_space<vmem>>, %arg3: memref<4x512xf32, #tpu.memory_space<vmem>>, %arg4: memref<1x512xf32, #tpu.memory_space<vmem>>, %arg5: memref<64x512xf32, #tpu.memory_space<vmem>>) attributes {dimension_semantics = [#tpu.dimension_semantics<parallel>, #tpu.dimension_semantics<parallel>], iteration_bounds = array<i64: 1, 1>, scalar_prefetch = 0 : i64, scratch_operands = 0 : i64, tpu.core_type = #tpu.core_type<tc>, window_params = [{transform_indices = @transform_0, window_bounds = array<i64: 64, 4>}, {pipeline_mode = #tpu.pipeline_mode<synchronous>, transform_indices = @transform_1, window_bounds = array<i64: 4, 512>}, {pipeline_mode = #tpu.pipeline_mode<synchronous>, transform_indices = @transform_2, window_bounds = array<i64: 1, 512>}, {transform_indices = @transform_3, window_bounds = array<i64: 64, 512>}]} {
    %c0 = arith.constant 0 : index
    %c0_0 = arith.constant 0 : index
    %0 = vector.load %arg2[%c0, %c0_0] : memref<64x4xf32, #tpu.memory_space<vmem>>, vector<64x4xf32>
    %c0_1 = arith.constant 0 : index
    %c0_2 = arith.constant 0 : index
    %1 = vector.load %arg3[%c0_1, %c0_2] : memref<4x512xf32, #tpu.memory_space<vmem>>, vector<4x512xf32>
    %cst = arith.constant dense<0.000000e+00> : vector<64x512xf32>
    %2 = tpu.matmul %0, %1, %cst {dimension_numbers = #tpu.dot_dimension_numbers<[1], [0], [0], [1], [0, 0, 1, 1], [], []>} : vector<64x4xf32>, vector<4x512xf32>, vector<64x512xf32> -> vector<64x512xf32>
    %c0_3 = arith.constant 0 : index
    %c0_4 = arith.constant 0 : index
    %3 = vector.load %arg4[%c0_3, %c0_4] : memref<1x512xf32, #tpu.memory_space<vmem>>, vector<1x512xf32>
    %4 = vector.broadcast %3 : vector<1x512xf32> to vector<64x512xf32>
    %5 = arith.addf %2, %4 : vector<64x512xf32>
    %c0_5 = arith.constant 0 : index
    %c0_6 = arith.constant 0 : index
    %6 = vector.load %arg5[%c0_5, %c0_6] : memref<64x512xf32, #tpu.memory_space<vmem>>, vector<64x512xf32>
    tpu.vector_store %arg5[%c0_5, %c0_6], %5 {strides = array<i32>} : memref<64x512xf32, #tpu.memory_space<vmem>>, vector<64x512xf32>,
    return
  }
  func.func @transform_0(%arg0: i32, %arg1: i32) -> (i32, i32) {
    %c0_i32 = arith.constant 0 : i32
    %c0_i32_0 = arith.constant 0 : i32
    return %arg0, %c0_i32 : i32, i32
  }
  func.func @transform_1(%arg0: i32, %arg1: i32) -> (i32, i32) {
    %c0_i32 = arith.constant 0 : i32
    %c0_i32_0 = arith.constant 0 : i32
    return %c0_i32, %arg1 : i32, i32
  }
  func.func @transform_2(%arg0: i32, %arg1: i32) -> (i32, i32) {
    %c0_i32 = arith.constant 0 : i32
    %c0_i32_0 = arith.constant 0 : i32
    return %c0_i32, %arg1 : i32, i32
  }
  func.func @transform_3(%arg0: i32, %arg1: i32) -> (i32, i32) {
    %c0_i32 = arith.constant 0 : i32
    return %arg0, %arg1 : i32, i32
  }
}

</mosaic_0001>

<llo_original>
// kernel: tpu_custom_call.1
$region0: #{tpu_custom_call.1}
  #allocation0 [shape = 'u32[]', space=smem, size = 0x4, offset = 0x4, fixed_abs, tag = 'smem constant byte address 0x4 - core index']
  #allocation1 [shape = 'u32[144,128]{1,0:T(1,128)}', space=vmem, size = 0x12000, scoped, tag = 'internal scratch']
  %s0 = inlined_call_operand.vmem [shape: f32[64,4], index: 0, kind: input, shape index: {}]
  %s1 = inlined_call_operand.vmem [shape: f32[4,512], index: 1, kind: input, shape index: {}]
  %s2 = inlined_call_operand.vmem [shape: f32[1,512], index: 2, kind: input, shape index: {}]
  %s3 = inlined_call_operand.hbm [shape: f32[64,512], index: 3, kind: output, shape index: {}]
  %s4 = sld [smem:[#allocation0]]
  $region22: #{tpu_custom_call.1} parent=0
    _
  %s6 = ssub.s32 1, %s4
  %s7 = scalar_select 0, %s6, %s4
  $region1: #{tpu_custom_call.1} parent=0
    #allocation2 [shape = 'u8[131072]{0}', space=vmem, size = 0x20000, scoped, tag = 'output window, operand 0, single buffered']
    #allocation3 [shape = 's32[1]{0}', space=sflag, size = 0x4, scoped, tag = 'scoped memory for tpu_custom_call.1']
    %8 = vsyncpa [#allocation3], 0
    // Predicated region
    $region2: #{tpu_custom_call.1} parent=1 // pred_check
      _
    $region3: #{tpu_custom_call.1} parent=1 // pred_check_branch
      %10 = sbr.rel (0) target = $region5
    $region4: #{tpu_custom_call.1} parent=1 // pred_region
      _
    $region5: #{tpu_custom_call.1} parent=1 // pred_fallthru
      _
    // Predicated region
    $region6: #{tpu_custom_call.1} parent=1 // pred_check
      _
    $region7: #{tpu_custom_call.1} parent=1 // pred_check_branch
      %12 = sbr.rel (0) target = $region9
    $region8: #{tpu_custom_call.1} parent=1 // pred_region
      _
    $region9: #{tpu_custom_call.1} parent=1 // pred_fallthru
      _
    // Predicated region
    $region10: #{tpu_custom_call.1} parent=1 // pred_check
      _
    $region11: #{tpu_custom_call.1} parent=1 // pred_check_branch
      %14 = sbr.rel (0) target = $region13
    $region12: #{tpu_custom_call.1} parent=1 // pred_region
      _
    $region13: #{tpu_custom_call.1} parent=1 // pred_fallthru
      _
    %v15 = vld [vmem:[%s0] sm:$0xff]
    %v16 = vld [vmem:[%s0 + $0x8] sm:$0xff]
    %v17 = vld [vmem:[%s0 + $0x10] sm:$0xff]
    %v18 = vld [vmem:[%s0 + $0x18] sm:$0xff]
    %v19 = vld [vmem:[%s0 + $0x20] sm:$0xff]
    %v20 = vld [vmem:[%s0 + $0x28] sm:$0xff]
    %v21 = vld [vmem:[%s0 + $0x30] sm:$0xff]
    %v22 = vld [vmem:[%s0 + $0x38] sm:$0xff]
    %v23 = vld [vmem:[%s1] sm:$0xff]
    %v24 = vld [vmem:[%s1 + $0x8] sm:$0xff]
    %v25 = vld [vmem:[%s2] sm:$0xf]
    %v27 = vlaneseq
    %v28 = vshrl.u32 %v27, 7
    %v29 = vsub.s32 0, %v28
    %v30 = vrot.slane %v25, %v29
    %v31 = vlaneseq
    %v32 = vshrl.u32 %v31, 7
    %v33 = vsub.s32 1, %v32
    %v34 = vrot.slane %v25, %v33
    %v35 = vlaneseq
    %v36 = vshrl.u32 %v35, 7
    %v37 = vsub.s32 2, %v36
    %v38 = vrot.slane %v25, %v37
    %v39 = vlaneseq
    %v40 = vshrl.u32 %v39, 7
    %v41 = vsub.s32 3, %v40
    %v42 = vrot.slane %v25, %v41
    %v49 = vcombine.high %v23, %v23
    %v50 = vcombine.high %v24, %v24
    %vm51 = vcmask 31744
    %v53 = vsel %vm51, %v15, 0
    %v56 = vsel %vm51, %v16, 0
    %v59 = vsel %vm51, %v17, 0
    %v62 = vsel %vm51, %v18, 0
    %v65 = vsel %vm51, %v19, 0
    %v68 = vsel %vm51, %v20, 0
    %v71 = vsel %vm51, %v21, 0
    %v74 = vsel %vm51, %v22, 0
    %vm76 = vcmask 1043456
    %v77 = vsel %vm76, %v23, 0
    %v79 = vsel %vm76, %v49, 0
    %v81 = vsel %vm76, %v24, 0
    %v83 = vsel %vm76, %v50, 0
    %85 = vmatprep.subr.mxu0 %v79
    %86 = vmatpush1.msra.mxu0 %v77
    %87 = vmatprep.subr.mxu0 0.0
    %88 = vmatpush1.msra.mxu0 0.0
    %89 = vmatprep.subr.mxu0 0.0
    %90 = vmatpush1.msra.mxu0 0.0
    %91 = vmatprep.subr.mxu0 0.0
    %92 = vmatpush1.msra.mxu0 0.0
    %93 = vmatprep.subr.mxu0 0.0
    %94 = vmatpush1.msra.mxu0 0.0
    %95 = vmatprep.subr.mxu0 0.0
    %96 = vmatpush1.msra.mxu0 0.0
    %97 = vmatprep.subr.mxu0 0.0
    %98 = vmatpush1.msra.mxu0 0.0
    %99 = vmatprep.subr.mxu0 0.0
    %100 = vmatpush1.msra.mxu0 0.0
    %101 = vmatprep.subr.mxu0 0.0
    %102 = vmatpush1.msra.mxu0 0.0
    %103 = vmatprep.subr.mxu0 0.0
    %104 = vmatpush1.msra.mxu0 0.0
    %105 = vmatprep.subr.mxu0 0.0
    %106 = vmatpush1.msra.mxu0 0.0
    %107 = vmatprep.subr.mxu0 0.0
    %108 = vmatpush1.msra.mxu0 0.0
    %109 = vmatprep.subr.mxu0 0.0
    %110 = vmatpush1.msra.mxu0 0.0
    %111 = vmatprep.subr.mxu0 0.0
    %112 = vmatpush1.msra.mxu0 0.0
    %113 = vmatprep.subr.mxu0 0.0
    %114 = vmatpush1.msra.mxu0 0.0
    %115 = vmatprep.subr.mxu0 0.0
    %116 = vmatpush1.msra.mxu0 0.0
    %117 = vmatprep.subr.mxu0 0.0
    %118 = vmatpush1.msra.mxu0 0.0
    %119 = vmatprep.subr.mxu0 0.0
    %120 = vmatpush1.msra.mxu0 0.0
    %121 = vmatprep.subr.mxu0 0.0
    %122 = vmatpush1.msra.mxu0 0.0
    %123 = vmatprep.subr.mxu0 0.0
    %124 = vmatpush1.msra.mxu0 0.0
    %125 = vmatprep.subr.mxu0 0.0
    %126 = vmatpush1.msra.mxu0 0.0
    %127 = vmatprep.subr.mxu0 0.0
    %128 = vmatpush1.msra.mxu0 0.0
    %129 = vmatprep.subr.mxu0 0.0
    %130 = vmatpush1.msra.mxu0 0.0
    %131 = vmatprep.subr.mxu0 0.0
    %132 = vmatpush1.msra.mxu0 0.0
    %133 = vmatprep.subr.mxu0 0.0
    %134 = vmatpush1.msra.mxu0 0.0
    %135 = vmatprep.subr.mxu0 0.0
    %136 = vmatpush1.msra.mxu0 0.0
    %137 = vmatprep.subr.mxu0 0.0
    %138 = vmatpush1.msra.mxu0 0.0
    %139 = vmatprep.subr.mxu0 0.0
    %140 = vmatpush1.msra.mxu0 0.0
    %141 = vmatprep.subr.mxu0 0.0
    %142 = vmatpush1.msra.mxu0 0.0
    %143 = vmatprep.subr.mxu0 0.0
    %144 = vmatpush1.msra.mxu0 0.0
    %145 = vmatprep.subr.mxu0 0.0
    %146 = vmatpush1.msra.mxu0 0.0
    %147 = vmatprep.subr.mxu0 0.0
    %148 = vmatpush1.msra.mxu0 0.0
    %149 = vmatprep.mubr.f32.mxu0 0.0
    %150 = vmatmul.mubr.f32.gmra.mrb[0].mxu0 %v53
    %v151 = vpop.f32.mrb[0].mxu0
    %v152 = vadd.f32 %v30, %v151
    %v153 = vpop.f32.mrb[0].mxu0
    %v154 = vadd.f32 %v34, %v153
    %155 = vmatprep.mubr.f32.mxu0 0.0
    %156 = vmatmul.mubr.f32.gmra.mrb[0].mxu0 %v56
    %v157 = vpop.f32.mrb[0].mxu0
    %v158 = vadd.f32 %v30, %v157
    %v159 = vpop.f32.mrb[0].mxu0
    %v160 = vadd.f32 %v34, %v159
    %161 = vmatprep.mubr.f32.mxu0 0.0
    %162 = vmatmul.mubr.f32.gmra.mrb[0].mxu0 %v59
    %v163 = vpop.f32.mrb[0].mxu0
    %v164 = vadd.f32 %v30, %v163
    %v165 = vpop.f32.mrb[0].mxu0
    %v166 = vadd.f32 %v34, %v165
    %167 = vmatprep.mubr.f32.mxu0 0.0
    %168 = vmatmul.mubr.f32.gmra.mrb[0].mxu0 %v62
    %v169 = vpop.f32.mrb[0].mxu0
    %v170 = vadd.f32 %v30, %v169
    %v171 = vpop.f32.mrb[0].mxu0
    %v172 = vadd.f32 %v34, %v171
    %173 = vmatprep.mubr.f32.mxu0 0.0
    %174 = vmatmul.mubr.f32.gmra.mrb[0].mxu0 %v65
    %v175 = vpop.f32.mrb[0].mxu0
    %v176 = vadd.f32 %v30, %v175
    %v177 = vpop.f32.mrb[0].mxu0
    %v178 = vadd.f32 %v34, %v177
    %179 = vmatprep.mubr.f32.mxu0 0.0
    %180 = vmatmul.mubr.f32.gmra.mrb[0].mxu0 %v68
    %v181 = vpop.f32.mrb[0].mxu0
    %v182 = vadd.f32 %v30, %v181
    %v183 = vpop.f32.mrb[0].mxu0
    %v184 = vadd.f32 %v34, %v183
    %185 = vmatprep.mubr.f32.mxu0 0.0
    %186 = vmatmul.mubr.f32.gmra.mrb[0].mxu0 %v71
    %v187 = vpop.f32.mrb[0].mxu0
    %v188 = vadd.f32 %v30, %v187
    %v189 = vpop.f32.mrb[0].mxu0
    %v190 = vadd.f32 %v34, %v189
    %191 = vmatprep.mubr.f32.mxu0 0.0
    %192 = vmatmul.mubr.f32.gmra.mrb[0].mxu0 %v74
    %v193 = vpop.f32.mrb[0].mxu0
    %v194 = vadd.f32 %v30, %v193
    %v195 = vpop.f32.mrb[0].mxu0
    %v196 = vadd.f32 %v34, %v195
    %197 = vdwg.mxu0
    %198 = vmatprep.subr.mxu0 %v83
    %199 = vmatpush1.msra.mxu0 %v81
    %200 = vmatprep.subr.mxu0 0.0
    %201 = vmatpush1.msra.mxu0 0.0
    %202 = vmatprep.subr.mxu0 0.0
    %203 = vmatpush1.msra.mxu0 0.0
    %204 = vmatprep.subr.mxu0 0.0
    %205 = vmatpush1.msra.mxu0 0.0
    %206 = vmatprep.subr.mxu0 0.0
    %207 = vmatpush1.msra.mxu0 0.0
    %208 = vmatprep.subr.mxu0 0.0
    %209 = vmatpush1.msra.mxu0 0.0
    %210 = vmatprep.subr.mxu0 0.0
    %211 = vmatpush1.msra.mxu0 0.0
    %212 = vmatprep.subr.mxu0 0.0
    %213 = vmatpush1.msra.mxu0 0.0
    %214 = vmatprep.subr.mxu0 0.0
    %215 = vmatpush1.msra.mxu0 0.0
    %216 = vmatprep.subr.mxu0 0.0
    %217 = vmatpush1.msra.mxu0 0.0
    %218 = vmatprep.subr.mxu0 0.0
    %219 = vmatpush1.msra.mxu0 0.0
    %220 = vmatprep.subr.mxu0 0.0
    %221 = vmatpush1.msra.mxu0 0.0
    %222 = vmatprep.subr.mxu0 0.0
    %223 = vmatpush1.msra.mxu0 0.0
    %224 = vmatprep.subr.mxu0 0.0
    %225 = vmatpush1.msra.mxu0 0.0
    %226 = vmatprep.subr.mxu0 0.0
    %227 = vmatpush1.msra.mxu0 0.0
    %228 = vmatprep.subr.mxu0 0.0
    %229 = vmatpush1.msra.mxu0 0.0
    %230 = vmatprep.subr.mxu0 0.0
    %231 = vmatpush1.msra.mxu0 0.0
    %232 = vmatprep.subr.mxu0 0.0
    %233 = vmatpush1.msra.mxu0 0.0
    %234 = vmatprep.subr.mxu0 0.0
    %235 = vmatpush1.msra.mxu0 0.0
    %236 = vmatprep.subr.mxu0 0.0
    %237 = vmatpush1.msra.mxu0 0.0
    %238 = vmatprep.subr.mxu0 0.0
    %239 = vmatpush1.msra.mxu0 0.0
    %240 = vmatprep.subr.mxu0 0.0
    %241 = vmatpush1.msra.mxu0 0.0
    %242 = vmatprep.subr.mxu0 0.0
    %243 = vmatpush1.msra.mxu0 0.0
    %244 = vmatprep.subr.mxu0 0.0
    %245 = vmatpush1.msra.mxu0 0.0
    %246 = vmatprep.subr.mxu0 0.0
    %247 = vmatpush1.msra.mxu0 0.0
    %248 = vmatprep.subr.mxu0 0.0
    %249 = vmatpush1.msra.mxu0 0.0
    %250 = vmatprep.subr.mxu0 0.0
    %251 = vmatpush1.msra.mxu0 0.0
    %252 = vmatprep.subr.mxu0 0.0
    %253 = vmatpush1.msra.mxu0 0.0
    %254 = vmatprep.subr.mxu0 0.0
    %255 = vmatpush1.msra.mxu0 0.0
    %256 = vmatprep.subr.mxu0 0.0
    %257 = vmatpush1.msra.mxu0 0.0
    %258 = vmatprep.subr.mxu0 0.0
    %259 = vmatpush1.msra.mxu0 0.0
    %260 = vmatprep.subr.mxu0 0.0
    %261 = vmatpush1.msra.mxu0 0.0
    %262 = vmatprep.mubr.f32.mxu0 0.0
    %263 = vmatmul.mubr.f32.gmra.mrb[0].mxu0 %v53
    %v264 = vpop.f32.mrb[0].mxu0
    %v265 = vadd.f32 %v38, %v264
    %v266 = vpop.f32.mrb[0].mxu0
    %v267 = vadd.f32 %v42, %v266
    %268 = vmatprep.mubr.f32.mxu0 0.0
    %269 = vmatmul.mubr.f32.gmra.mrb[0].mxu0 %v56
    %v270 = vpop.f32.mrb[0].mxu0
    %v271 = vadd.f32 %v38, %v270
    %v272 = vpop.f32.mrb[0].mxu0
    %v273 = vadd.f32 %v42, %v272
    %274 = vmatprep.mubr.f32.mxu0 0.0
    %275 = vmatmul.mubr.f32.gmra.mrb[0].mxu0 %v59
    %v276 = vpop.f32.mrb[0].mxu0
    %v277 = vadd.f32 %v38, %v276
    %v278 = vpop.f32.mrb[0].mxu0
    %v279 = vadd.f32 %v42, %v278
    %280 = vmatprep.mubr.f32.mxu0 0.0
    %281 = vmatmul.mubr.f32.gmra.mrb[0].mxu0 %v62
    %v282 = vpop.f32.mrb[0].mxu0
    %v283 = vadd.f32 %v38, %v282
    %v284 = vpop.f32.mrb[0].mxu0
    %v285 = vadd.f32 %v42, %v284
    %286 = vmatprep.mubr.f32.mxu0 0.0
    %287 = vmatmul.mubr.f32.gmra.mrb[0].mxu0 %v65
    %v288 = vpop.f32.mrb[0].mxu0
    %v289 = vadd.f32 %v38, %v288
    %v290 = vpop.f32.mrb[0].mxu0
    %v291 = vadd.f32 %v42, %v290
    %292 = vmatprep.mubr.f32.mxu0 0.0
    %293 = vmatmul.mubr.f32.gmra.mrb[0].mxu0 %v68
    %v294 = vpop.f32.mrb[0].mxu0
    %v295 = vadd.f32 %v38, %v294
    %v296 = vpop.f32.mrb[0].mxu0
    %v297 = vadd.f32 %v42, %v296
    %298 = vmatprep.mubr.f32.mxu0 0.0
    %299 = vmatmul.mubr.f32.gmra.mrb[0].mxu0 %v71
    %v300 = vpop.f32.mrb[0].mxu0
    %v301 = vadd.f32 %v38, %v300
    %v302 = vpop.f32.mrb[0].mxu0
    %v303 = vadd.f32 %v42, %v302
    %304 = vmatprep.mubr.f32.mxu0 0.0
    %305 = vmatmul.mubr.f32.gmra.mrb[0].mxu0 %v74
    %v306 = vpop.f32.mrb[0].mxu0
    %v307 = vadd.f32 %v38, %v306
    %v308 = vpop.f32.mrb[0].mxu0
    %v309 = vadd.f32 %v42, %v308
    %310 = vdwg.mxu0
    %311 = vst [vmem:[#allocation2] sm:$0xff] %v152
    %312 = vst [vmem:[#allocation2 + $0x8] sm:$0xff] %v154
    %313 = vst [vmem:[#allocation2 + $0x10] sm:$0xff] %v265
    %314 = vst [vmem:[#allocation2 + $0x18] sm:$0xff] %v267
    %315 = vst [vmem:[#allocation2 + $0x20] sm:$0xff] %v158
    %316 = vst [vmem:[#allocation2 + $0x28] sm:$0xff] %v160
    %317 = vst [vmem:[#allocation2 + $0x30] sm:$0xff] %v271
    %318 = vst [vmem:[#allocation2 + $0x38] sm:$0xff] %v273
    %319 = vst [vmem:[#allocation2 + $0x40] sm:$0xff] %v164
    %320 = vst [vmem:[#allocation2 + $0x48] sm:$0xff] %v166
    %321 = vst [vmem:[#allocation2 + $0x50] sm:$0xff] %v277
    %322 = vst [vmem:[#allocation2 + $0x58] sm:$0xff] %v279
    %323 = vst [vmem:[#allocation2 + $0x60] sm:$0xff] %v170
    %324 = vst [vmem:[#allocation2 + $0x68] sm:$0xff] %v172
    %325 = vst [vmem:[#allocation2 + $0x70] sm:$0xff] %v283
    %326 = vst [vmem:[#allocation2 + $0x78] sm:$0xff] %v285
    %327 = vst [vmem:[#allocation2 + $0x80] sm:$0xff] %v176
    %328 = vst [vmem:[#allocation2 + $0x88] sm:$0xff] %v178
    %329 = vst [vmem:[#allocation2 + $0x90] sm:$0xff] %v289
    %330 = vst [vmem:[#allocation2 + $0x98] sm:$0xff] %v291
    %331 = vst [vmem:[#allocation2 + $0xa0] sm:$0xff] %v182
    %332 = vst [vmem:[#allocation2 + $0xa8] sm:$0xff] %v184
    %333 = vst [vmem:[#allocation2 + $0xb0] sm:$0xff] %v295
    %334 = vst [vmem:[#allocation2 + $0xb8] sm:$0xff] %v297
    %335 = vst [vmem:[#allocation2 + $0xc0] sm:$0xff] %v188
    %336 = vst [vmem:[#allocation2 + $0xc8] sm:$0xff] %v190
    %337 = vst [vmem:[#allocation2 + $0xd0] sm:$0xff] %v301
    %338 = vst [vmem:[#allocation2 + $0xd8] sm:$0xff] %v303
    %339 = vst [vmem:[#allocation2 + $0xe0] sm:$0xff] %v194
    %340 = vst [vmem:[#allocation2 + $0xe8] sm:$0xff] %v196
    %341 = vst [vmem:[#allocation2 + $0xf0] sm:$0xff] %v307
    %342 = vst [vmem:[#allocation2 + $0xf8] sm:$0xff] %v309
    // Predicated region
    $region14: #{tpu_custom_call.1} parent=1 // pred_check
      _
    $region15: #{tpu_custom_call.1} parent=1 // pred_check_branch
      %344 = sbr.rel (0) target = $region17
    $region16: #{tpu_custom_call.1} parent=1 // pred_region
      %s346 = ssub.s32 4096, 4096
      %347 = vsyncadd [#allocation3], %s346
      %s348 = sshll.u32 [#allocation2], 4
      %s349 = int_to_ptr.vmem [resolvable:$true] %s348
      %354 = dma.vmem_to_hbm [thread:$0]  %s349, 4096, %s3, [#allocation3], 512, 512, 32
    $region17: #{tpu_custom_call.1} parent=1 // pred_fallthru
      _
    // Predicated region
    $region18: #{tpu_custom_call.1} parent=1 // pred_check
      _
    $region19: #{tpu_custom_call.1} parent=1 // pred_check_branch
      %356 = sbr.rel (0) target = $region21
    $region20: #{tpu_custom_call.1} parent=1 // pred_region
      %357 = dma.done [#allocation3], 4096
    $region21: #{tpu_custom_call.1} parent=1 // pred_fallthru
      _
    %358 = vsyncpa [#allocation3], 1

</llo_original>
